<compile_context>
chip_gen: v5e
topology: v5e:2x2
jax: 0.10.0
libtpu: 0.0.40
codegen_flags: <defaults>
</compile_context>

<pallas_src>
import jax
import jax.numpy as jnp
from jax import lax
from jax.experimental import pallas as pl
from jax.experimental.pallas import tpu as pltpu

_SQRT_HALF = 0.7071067811865476  # 1/sqrt(2)


def _gelu_exact(x):
    # nn.GELU() default = exact (erf-based) formulation; computed in f32.
    return 0.5 * x * (1.0 + lax.erf(x * _SQRT_HALF))


def feedforward_kernel(x_ref, w1_ref, b1_ref, w2_ref, b2_ref, o_ref, *scratch):
    # x_ref:   (tm, dim)        row tile of flattened tokens (MXU dtype)
    # w1_ref:  (dim, th)        fc1 weight tile, pre-transposed [in, out]
    # b1_ref:  (1, th)          fc1 bias tile (f32)
    # w2_ref:  (th, out_dim)    fc2 weight tile, pre-transposed [in, out]
    # b2_ref:  (1, out_dim)     fc2 bias (f32)
    # o_ref:   (tm, out_dim)    output tile (revisited across k)
    # scratch: optional (tm, out_dim) f32 accumulator (only if out dtype != f32)
    acc_ref = scratch[0] if scratch else o_ref
    k = pl.program_id(1)

    @pl.when(k == 0)
    def _init():
        # Initialize the accumulator with the (broadcast) fc2 bias: saves the
        # finalize add and one pass over the (tm, out_dim) tile.
        acc_ref[...] = jnp.broadcast_to(
            b2_ref[...].astype(jnp.float32), acc_ref.shape)

    # fc1 partial for this hidden tile: (tm, dim) @ (dim, th) -> (tm, th), f32.
    h = jnp.dot(x_ref[...], w1_ref[...], preferred_element_type=jnp.float32)
    h = _gelu_exact(h + b1_ref[...].astype(jnp.float32))
    # dropout -> identity (eval mode)

    # fc2 partial: (tm, th) @ (th, out_dim) -> (tm, out_dim), f32 accumulation.
    # The cast feeds the MXU in its native dtype (no-op on the f32 path).
    acc_ref[...] += jnp.dot(h.astype(w2_ref.dtype), w2_ref[...],
                            preferred_element_type=jnp.float32)

    if scratch:
        @pl.when(k == pl.num_programs(1) - 1)
        def _finalize():
            o_ref[...] = acc_ref[...].astype(o_ref.dtype)
    # dropout -> identity (eval mode)


def _round_up(v, m):
    return ((v + m - 1) // m) * m


def _vmem_capacity_bytes():
    try:
        cap = int(pltpu.get_tpu_info().vmem_capacity_bytes)
        return max(32 << 20, min(cap, 128 << 20))
    except Exception:
        return 64 << 20  # conservative (v7x per-TC VMEM)


def feedforward(x, w1, b1, w2, b2, *, tm=512, th=512,
                mxu_dtype=jnp.bfloat16, dropout_rate=0.0, training=False):
    """FeedForward forward pass (eval-mode dropout = identity).

    x:  [B, N, dim]
    w1: [hidden, dim]       (PyTorch nn.Linear weight layout, NOT transposed)
    b1: [hidden]
    w2: [out_dim, hidden]
    b2: [out_dim]
    mxu_dtype: dtype for MXU operands (default bf16); None -> keep x.dtype.
    """
    if training and dropout_rate > 0.0:
        # TODO(synk): training-mode dropout (stateful PRNG masking) not implemented.
        raise NotImplementedError("training-mode dropout is not implemented")

    B, N, dim = x.shape
    hidden, dim_w = w1.shape
    out_dim, hidden_w = w2.shape
    assert dim_w == dim and hidden_w == hidden
    assert b1.shape == (hidden,) and b2.shape == (out_dim,)

    out_dtype = x.dtype
    if mxu_dtype is None:
        mxu_dtype = x.dtype
    mxu_dtype = jnp.dtype(mxu_dtype)
    mxu_bytes = mxu_dtype.itemsize
    out_bytes = jnp.dtype(out_dtype).itemsize
    use_scratch = jnp.dtype(out_dtype) != jnp.dtype(jnp.float32)

    M = B * N
    # Dtype-aware sublane alignment: 8 (32-bit), 16 (16-bit), 32 (8-bit).
    align = max(8, 32 // mxu_bytes)

    # --- hidden-axis tile: multiples of 128 that divide `hidden` ---------------
    th_cands = [d for d in range(128, hidden + 1, 128) if hidden % d == 0]
    th_cands.sort(reverse=True)
    if not th_cands:
        th_cands = [hidden]                      # small models: single hidden tile
    th = next((d for d in th_cands if d <= th), th_cands[-1])

    # --- row tile: big, sublane-aligned, never larger than the work ------------
    tm = min(int(tm), _round_up(M, align))
    tm = max(align, (tm // align) * align)

    # --- fit the double-buffered working set inside the VMEM budget ------------
    vmem_cap = _vmem_capacity_bytes()
    budget = int(vmem_cap * 0.75)

    def _est(tm_, th_):
        return (2 * tm_ * dim * mxu_bytes            # x tile (double buffered)
                + 2 * dim * th_ * mxu_bytes          # fc1 weight tile
                + 2 * th_ * out_dim * mxu_bytes      # fc2 weight tile
                + 2 * (th_ + out_dim) * 4            # bias tiles
                + 2 * tm_ * out_dim * out_bytes      # output tile
                + (tm_ * out_dim * 4 if use_scratch else 0)  # f32 acc scratch
                + 2 * tm_ * th_ * 4)                 # fc1/GELU f32 intermediate

    while _est(tm, th) > budget:
        smaller = [d for d in th_cands if d < th]
        if smaller:
            th = smaller[0]
        elif tm > align:
            tm = max(align, ((tm // 2) // align) * align)
        else:
            break

    kt = hidden // th
    num_row_tiles = pl.cdiv(M, tm)
    grid = (num_row_tiles, kt)
    vmem_limit = int(min(vmem_cap, max(2 * _est(tm, th), 32 << 20)))

    # --- one-time wrapper-side layout / dtype prep ------------------------------
    x2d = x.reshape(M, dim).astype(mxu_dtype)
    w1t = jnp.transpose(w1).astype(mxu_dtype)     # [dim, hidden]  MXU-native K-major
    w2t = jnp.transpose(w2).astype(mxu_dtype)     # [hidden, out_dim]
    b1r = b1.reshape(1, hidden).astype(jnp.float32)
    b2r = b2.reshape(1, out_dim).astype(jnp.float32)

    cost = pl.CostEstimate(
        flops=2 * M * dim * hidden + 2 * M * hidden * out_dim,
        transcendentals=M * hidden,               # one erf per GELU element
        bytes_accessed=(M * dim * mxu_bytes
                        + num_row_tiles * (dim * hidden + hidden * out_dim) * mxu_bytes
                        + (hidden + out_dim) * 4
                        + M * out_dim * out_bytes),
    )

    scratch_shapes = ([pltpu.VMEM((tm, out_dim), jnp.float32)]
                      if use_scratch else [])

    out = pl.pallas_call(
        feedforward_kernel,
        out_shape=jax.ShapeDtypeStruct((M, out_dim), out_dtype),
        grid_spec=pltpu.PrefetchScalarGridSpec(
            num_scalar_prefetch=0,
            grid=grid,
            in_specs=[
                pl.BlockSpec((tm, dim), lambda i, k: (i, 0)),       # x row tile
                pl.BlockSpec((dim, th), lambda i, k: (0, k)),       # fc1 weight tile
                pl.BlockSpec((1, th), lambda i, k: (0, k)),         # fc1 bias tile
                pl.BlockSpec((th, out_dim), lambda i, k: (k, 0)),   # fc2 weight tile
                pl.BlockSpec((1, out_dim), lambda i, k: (0, 0)),    # fc2 bias
            ],
            out_specs=pl.BlockSpec((tm, out_dim), lambda i, k: (i, 0)),
            scratch_shapes=scratch_shapes,
        ),
        compiler_params=pltpu.CompilerParams(
            dimension_semantics=("parallel", "arbitrary"),
            vmem_limit_bytes=vmem_limit),
        cost_estimate=cost,
    )(x2d, w1t, b1r, w2t, b2r)

    return out.reshape(B, N, out_dim)


def reference(x, w1, b1, w2, b2):
    h = jnp.einsum("bnd,hd->bnh", x, w1) + b1
    h = jax.nn.gelu(h, approximate=False)
    return jnp.einsum("bnh,oh->bno", h, w2) + b2


def _linear_init(key, out_f, in_f):
    kw, kb = jax.random.split(key)
    lim = 1.0 / jnp.sqrt(in_f)
    w = jax.random.uniform(kw, (out_f, in_f), jnp.float32, -lim, lim)
    b = jax.random.uniform(kb, (out_f,), jnp.float32, -lim, lim)
    return w, b


if __name__ == "__main__":
    key = jax.random.PRNGKey(0)

    # --- test 1: tiny shapes, bf16 MXU path, single hidden tile ----------------
    B, N, dim, hidden_dim, out_dim = 2, 8, 32, 64, 32
    k_x, k_l1, k_l2, key = jax.random.split(key, 4)
    x = jax.random.normal(k_x, (B, N, dim), dtype=jnp.float32)
    w1, b1 = _linear_init(k_l1, hidden_dim, dim)
    w2, b2 = _linear_init(k_l2, out_dim, hidden_dim)

    y = jax.block_until_ready(feedforward(x, w1, b1, w2, b2))
    y_ref = reference(x, w1, b1, w2, b2)
    assert y.shape == (B, N, out_dim)
    assert jnp.allclose(y, y_ref, atol=5e-2, rtol=5e-2), "test1 mismatch (bf16 path)"

    # --- test 2: ragged rows (partial edge block) + 2 k-steps, full-f32 path ---
    B, N, dim, hidden_dim, out_dim = 2, 13, 32, 256, 32
    k_x, k_l1, k_l2, key = jax.random.split(key, 4)
    x = jax.random.normal(k_x, (B, N, dim), dtype=jnp.float32)
    w1, b1 = _linear_init(k_l1, hidden_dim, dim)
    w2, b2 = _linear_init(k_l2, out_dim, hidden_dim)
    y_ref = reference(x, w1, b1, w2, b2)

    y = jax.block_until_ready(feedforward(x, w1, b1, w2, b2, th=128, mxu_dtype=None))
    assert y.shape == (B, N, out_dim)
    assert jnp.allclose(y, y_ref, atol=2e-5, rtol=2e-5), "test2 mismatch (f32 path)"

    # --- test 3: ragged rows + 2 k-steps, bf16 MXU path ------------------------
    y = jax.block_until_ready(feedforward(x, w1, b1, w2, b2, th=128))
    assert y.shape == (B, N, out_dim)
    assert jnp.allclose(y, y_ref, atol=5e-2, rtol=5e-2), "test3 mismatch (bf16 path)"

    print("KERNEL_OK")
</pallas_src>

<mosaic_0001>
module attributes {stable_mosaic.version = 11 : i64} {
  func.func @feedforward_kernel(%arg0: i32, %arg1: i32, %arg2: memref<16x32xbf16, #tpu.memory_space<vmem>>, %arg3: memref<32x64xbf16, #tpu.memory_space<vmem>>, %arg4: memref<1x64xf32, #tpu.memory_space<vmem>>, %arg5: memref<64x32xbf16, #tpu.memory_space<vmem>>, %arg6: memref<1x32xf32, #tpu.memory_space<vmem>>, %arg7: memref<16x32xf32, #tpu.memory_space<vmem>>) attributes {dimension_semantics = [#tpu.dimension_semantics<parallel>, #tpu.dimension_semantics<arbitrary>], iteration_bounds = array<i64: 1, 1>, scalar_prefetch = 0 : i64, scratch_operands = 0 : i64, tpu.core_type = #tpu.core_type<tc>, window_params = [{transform_indices = @transform_0, window_bounds = array<i64: 16, 32>}, {transform_indices = @transform_1, window_bounds = array<i64: 32, 64>}, {transform_indices = @transform_2, window_bounds = array<i64: 1, 64>}, {transform_indices = @transform_3, window_bounds = array<i64: 64, 32>}, {pipeline_mode = #tpu.pipeline_mode<synchronous>, transform_indices = @transform_4, window_bounds = array<i64: 1, 32>}, {transform_indices = @transform_5, window_bounds = array<i64: 16, 32>}]} {
    %c0_i32 = arith.constant 0 : i32
    %0 = arith.cmpi eq, %arg1, %c0_i32 : i32
    %1 = arith.extui %0 : i1 to i32
    %c0_i32_0 = arith.constant 0 : i32
    %2 = arith.cmpi ne, %1, %c0_i32_0 : i32
    scf.if %2 {
      %c0_16 = arith.constant 0 : index
      %c0_17 = arith.constant 0 : index
      %23 = vector.load %arg6[%c0_16, %c0_17] : memref<1x32xf32, #tpu.memory_space<vmem>>, vector<1x32xf32>
      %24 = vector.shape_cast %23 : vector<1x32xf32> to vector<1x32xf32>
      %25 = vector.broadcast %24 : vector<1x32xf32> to vector<16x32xf32>
      %c0_18 = arith.constant 0 : index
      %c0_19 = arith.constant 0 : index
      %26 = vector.load %arg7[%c0_18, %c0_19] : memref<16x32xf32, #tpu.memory_space<vmem>>, vector<16x32xf32>
      tpu.vector_store %arg7[%c0_18, %c0_19], %25 {strides = array<i32>} : memref<16x32xf32, #tpu.memory_space<vmem>>, vector<16x32xf32>,
    } else {
    }
    %c0 = arith.constant 0 : index
    %c0_1 = arith.constant 0 : index
    %3 = vector.load %arg2[%c0, %c0_1] : memref<16x32xbf16, #tpu.memory_space<vmem>>, vector<16x32xbf16>
    %c0_2 = arith.constant 0 : index
    %c0_3 = arith.constant 0 : index
    %4 = vector.load %arg3[%c0_2, %c0_3] : memref<32x64xbf16, #tpu.memory_space<vmem>>, vector<32x64xbf16>
    %cst = arith.constant dense<0.000000e+00> : vector<16x64xf32>
    %5 = tpu.matmul %3, %4, %cst {dimension_numbers = #tpu.dot_dimension_numbers<[1], [0], [0], [1], [0, 0, 1, 1], [], []>} : vector<16x32xbf16>, vector<32x64xbf16>, vector<16x64xf32> -> vector<16x64xf32>
    %c0_4 = arith.constant 0 : index
    %c0_5 = arith.constant 0 : index
    %6 = vector.load %arg4[%c0_4, %c0_5] : memref<1x64xf32, #tpu.memory_space<vmem>>, vector<1x64xf32>
    %7 = vector.broadcast %6 : vector<1x64xf32> to vector<16x64xf32>
    %8 = arith.addf %5, %7 : vector<16x64xf32>
    %cst_6 = arith.constant 5.000000e-01 : f32
    %9 = vector.broadcast %cst_6 : f32 to vector<16x64xf32>
    %10 = arith.mulf %9, %8 : vector<16x64xf32>
    %cst_7 = arith.constant 0.707106769 : f32
    %11 = vector.broadcast %cst_7 : f32 to vector<16x64xf32>
    %12 = arith.mulf %8, %11 : vector<16x64xf32>
    %13 = math.erf %12 : vector<16x64xf32>
    %cst_8 = arith.constant 1.000000e+00 : f32
    %14 = vector.broadcast %cst_8 : f32 to vector<16x64xf32>
    %15 = arith.addf %14, %13 : vector<16x64xf32>
    %16 = arith.mulf %10, %15 : vector<16x64xf32>
    %c0_9 = arith.constant 0 : index
    %c0_10 = arith.constant 0 : index
    %17 = vector.load %arg7[%c0_9, %c0_10] : memref<16x32xf32, #tpu.memory_space<vmem>>, vector<16x32xf32>
    %18 = arith.truncf %16 : vector<16x64xf32> to vector<16x64xbf16>
    %c0_11 = arith.constant 0 : index
    %c0_12 = arith.constant 0 : index
    %19 = vector.load %arg5[%c0_11, %c0_12] : memref<64x32xbf16, #tpu.memory_space<vmem>>, vector<64x32xbf16>
    %cst_13 = arith.constant dense<0.000000e+00> : vector<16x32xf32>
    %20 = tpu.matmul %18, %19, %cst_13 {dimension_numbers = #tpu.dot_dimension_numbers<[1], [0], [0], [1], [0, 0, 1, 1], [], []>} : vector<16x64xbf16>, vector<64x32xbf16>, vector<16x32xf32> -> vector<16x32xf32>
    %21 = arith.addf %17, %20 : vector<16x32xf32>
    %c0_14 = arith.constant 0 : index
    %c0_15 = arith.constant 0 : index
    %22 = vector.load %arg7[%c0_14, %c0_15] : memref<16x32xf32, #tpu.memory_space<vmem>>, vector<16x32xf32>
    tpu.vector_store %arg7[%c0_14, %c0_15], %21 {strides = array<i32>} : memref<16x32xf32, #tpu.memory_space<vmem>>, vector<16x32xf32>,
    return
  }
  func.func @transform_0(%arg0: i32, %arg1: i32) -> (i32, i32) {
    %c0_i32 = arith.constant 0 : i32
    %c0_i32_0 = arith.constant 0 : i32
    return %arg0, %c0_i32 : i32, i32
  }
  func.func @transform_1(%arg0: i32, %arg1: i32) -> (i32, i32) {
    %c0_i32 = arith.constant 0 : i32
    %c0_i32_0 = arith.constant 0 : i32
    return %c0_i32, %arg1 : i32, i32
  }
  func.func @transform_2(%arg0: i32, %arg1: i32) -> (i32, i32) {
    %c0_i32 = arith.constant 0 : i32
    %c0_i32_0 = arith.constant 0 : i32
    return %c0_i32, %arg1 : i32, i32
  }
  func.func @transform_3(%arg0: i32, %arg1: i32) -> (i32, i32) {
    %c0_i32 = arith.constant 0 : i32
    %c0_i32_0 = arith.constant 0 : i32
    return %arg1, %c0_i32 : i32, i32
  }
  func.func @transform_4(%arg0: i32, %arg1: i32) -> (i32, i32) {
    %c0_i32 = arith.constant 0 : i32
    %c0_i32_0 = arith.constant 0 : i32
    %c0_i32_1 = arith.constant 0 : i32
    return %c0_i32, %c0_i32_0 : i32, i32
  }
  func.func @transform_5(%arg0: i32, %arg1: i32) -> (i32, i32) {
    %c0_i32 = arith.constant 0 : i32
    %c0_i32_0 = arith.constant 0 : i32
    return %arg0, %c0_i32 : i32, i32
  }
}

</mosaic_0001>

<llo_original>
// kernel: tpu_custom_call.1
$region0: #{tpu_custom_call.1}
  #allocation0 [shape = 'u32[]', space=smem, size = 0x4, offset = 0x4, fixed_abs, tag = 'smem constant byte address 0x4 - core index']
  #allocation1 [shape = 'u32[72,128]{1,0:T(1,128)}', space=vmem, size = 0x9000, scoped, tag = 'internal scratch']
  %s0 = inlined_call_operand.vmem [shape: bf16[16,32], index: 0, kind: input, shape index: {}]
  %s1 = inlined_call_operand.vmem [shape: bf16[32,64], index: 1, kind: input, shape index: {}]
  %s2 = inlined_call_operand.vmem [shape: f32[1,64], index: 2, kind: input, shape index: {}]
  %s3 = inlined_call_operand.vmem [shape: bf16[64,32], index: 3, kind: input, shape index: {}]
  %s4 = inlined_call_operand.vmem [shape: f32[1,32], index: 4, kind: input, shape index: {}]
  %s5 = inlined_call_operand.hbm [shape: f32[16,32], index: 5, kind: output, shape index: {}]
  %s6 = sld [smem:[#allocation0]]
  $region34: #{tpu_custom_call.1} parent=0
    _
  %s8 = ssub.s32 1, %s6
  %s9 = scalar_select 0, %s8, %s6
  $region1: #{tpu_custom_call.1} parent=0
    #allocation2 [shape = 'u8[8192]{0}', space=vmem, size = 0x2000, scoped, tag = 'output window, operand 0, single buffered']
    #allocation3 [shape = 's32[1]{0}', space=sflag, size = 0x4, scoped, tag = 'scoped memory for tpu_custom_call.1']
    %10 = vsyncpa [#allocation3], 0
    // Predicated region
    $region2: #{tpu_custom_call.1} parent=1 // pred_check
      _
    $region3: #{tpu_custom_call.1} parent=1 // pred_check_branch
      %12 = sbr.rel (0) target = $region5
    $region4: #{tpu_custom_call.1} parent=1 // pred_region
      _
    $region5: #{tpu_custom_call.1} parent=1 // pred_fallthru
      _
    // Predicated region
    $region6: #{tpu_custom_call.1} parent=1 // pred_check
      _
    $region7: #{tpu_custom_call.1} parent=1 // pred_check_branch
      %14 = sbr.rel (0) target = $region9
    $region8: #{tpu_custom_call.1} parent=1 // pred_region
      _
    $region9: #{tpu_custom_call.1} parent=1 // pred_fallthru
      _
    // Predicated region
    $region10: #{tpu_custom_call.1} parent=1 // pred_check
      _
    $region11: #{tpu_custom_call.1} parent=1 // pred_check_branch
      %16 = sbr.rel (0) target = $region13
    $region12: #{tpu_custom_call.1} parent=1 // pred_region
      _
    $region13: #{tpu_custom_call.1} parent=1 // pred_fallthru
      _
    // Predicated region
    $region14: #{tpu_custom_call.1} parent=1 // pred_check
      _
    $region15: #{tpu_custom_call.1} parent=1 // pred_check_branch
      %18 = sbr.rel (0) target = $region17
    $region16: #{tpu_custom_call.1} parent=1 // pred_region
      _
    $region17: #{tpu_custom_call.1} parent=1 // pred_fallthru
      _
    // Predicated region
    $region18: #{tpu_custom_call.1} parent=1 // pred_check
      _
    $region19: #{tpu_custom_call.1} parent=1 // pred_check_branch
      %20 = sbr.rel (0) target = $region21
    $region20: #{tpu_custom_call.1} parent=1 // pred_region
      _
    $region21: #{tpu_custom_call.1} parent=1 // pred_fallthru
      _
    %p22 = scmp.eq.s32.totalorder 0, 0
    // Predicated region
    $region22: #{tpu_custom_call.1} parent=1 // pred_check
      %p23 = pneg %p22
    $region23: #{tpu_custom_call.1} parent=1 // pred_check_branch
      %25 = sbr.rel (%p23) target = $region25
    $region24: #{tpu_custom_call.1} parent=1 // pred_region
      %v26 = vld [vmem:[%s4] sm:$0x1]
      %v28 = vperm.slane %v26, 0
      %vm30 = vcmask 261120
      %31 = vst.msk [vmem:[#allocation2] sm:$0xff] %vm30, %v28
      %32 = vst.msk [vmem:[#allocation2 + $0x8] sm:$0xff] %vm30, %v28
    $region25: #{tpu_custom_call.1} parent=1 // pred_fallthru
      _
    %v33 = vld [vmem:[%s0] sm:$0xf]
    %v34 = vld [vmem:[%s0 + $0x4] sm:$0xf]
    %v35 = vld [vmem:[%s1] sm:$0xf]
    %v36 = vld [vmem:[%s1 + $0x4] sm:$0xf]
    %v37 = vld [vmem:[%s1 + $0x8] sm:$0xf]
    %v38 = vld [vmem:[%s1 + $0xc] sm:$0xf]
    %v39 = vld [vmem:[%s2] sm:$0x1]
    %v41 = vperm.slane %v39, 0
    %v45 = vunpack.c.l.b16 %v33
    %v46 = vunpack.c.l.b16 %v34
    %v47 = vpack.c.b16 %v46, %v45
    %v52 = vunpack.c.l.b16 %v35
    %v53 = vunpack.c.l.b16 %v36
    %v54 = vunpack.c.l.b16 %v37
    %v55 = vunpack.c.l.b16 %v38
    %v56 = vpack.c.b16 %v53, %v52
    %v57 = vpack.c.b16 %v55, %v54
    %vm60 = vcmask 261120
    %v62 = vsel %vm60, %v47, 0
    %64 = vmatpush.bf16.msra.mxu0 0
    %65 = vmatpush.bf16.msra.mxu0 0
    %66 = vmatpush.bf16.msra.mxu0 0
    %67 = vmatpush.bf16.msra.mxu0 0
    %68 = vmatpush.bf16.msra.mxu0 0
    %69 = vmatpush.bf16.msra.mxu0 0
    %70 = vmatpush.bf16.msra.mxu0 %v57
    %71 = vmatpush.bf16.msra.mxu0 %v56
    %72 = vmatmul.bf16.gmra.mxu0 %v62
    %v73 = vpop.f32.mrf.mxu0
    %v74 = vadd.f32 %v41, %v73
    %v75 = vpop.f32.mrf.mxu0
    %v76 = vadd.f32 %v41, %v75
    %77 = vdwg.mxu0
    %v78 = vmul.f32 %v74, 0.5
    %v79 = vmul.f32 %v76, 0.5
    %v80 = vmul.f32 %v74, 0.70710677
    %v81 = vmul.f32 %v76, 0.70710677
    %v82 = vmul.f32 %v80, %v80
    %v83 = vmin.f32 16.0, %v82
    %v84 = vmul.f32 %v83, 2.1237322e-06
    %v85 = vadd.f32 %v84, 0.00028619796
    %v86 = vmul.f32 %v83, %v85
    %v87 = vadd.f32 %v86, 0.0036580483
    %v88 = vmul.f32 %v83, %v87
    %v89 = vadd.f32 %v88, 0.05243302
    %v90 = vmul.f32 %v83, %v89
    %v91 = vadd.f32 %v90, 0.18741608
    %v92 = vmul.f32 %v83, %v91
    %v93 = vadd.f32 %v92, 1.1283791
    %v94 = vmul.f32 %v80, %v93
    %v95 = vmul.f32 %v83, 3.8918573e-05
    %v96 = vadd.f32 %v95, 0.001143296
    %v97 = vmul.f32 %v83, %v96
    %v98 = vadd.f32 %v97, 0.014752088
    %v99 = vmul.f32 %v83, %v98
    %v100 = vadd.f32 %v99, 0.112945676
    %v101 = vmul.f32 %v83, %v100
    %v102 = vadd.f32 %v101, 0.4994258
    %v103 = vmul.f32 %v83, %v102
    %v104 = vadd.f32 %v103, 1.0
    %v105 = vrcp.pop %v104
    %v106 = vmul.f32 %v104, %v105
    %v107 = vsub.f32 1.0, %v106
    %v108 = vmul.f32 %v105, %v107
    %v109 = vadd.f32 %v105, %v108
    %vm110 = vweird.f32 %v104
    %vm111 = vweird.f32 %v105
    %vm112 = vmor %vm110, %vm111
    %v113 = vsel %vm112, %v105, %v109
    %v114 = vand.u32 2147483647, %v104
    %vm115 = vcmp.eq.f32.partialorder %v114, 8.507059e+37
    %v116 = vand.u32 %v104, 2147483648
    %v117 = vor.u32 1.1754944e-38, %v116
    %v118 = vsel %vm115, %v117, %v113
    %v119 = vmul.f32 %v94, %v118
    %v120 = vmin.f32 %v119, 1.0
    %v121 = vmax.f32 %v120, -1.0
    %v122 = vmul.f32 %v81, %v81
    %v123 = vmin.f32 16.0, %v122
    %v124 = vmul.f32 %v123, 2.1237322e-06
    %v125 = vadd.f32 %v124, 0.00028619796
    %v126 = vmul.f32 %v123, %v125
    %v127 = vadd.f32 %v126, 0.0036580483
    %v128 = vmul.f32 %v123, %v127
    %v129 = vadd.f32 %v128, 0.05243302
    %v130 = vmul.f32 %v123, %v129
    %v131 = vadd.f32 %v130, 0.18741608
    %v132 = vmul.f32 %v123, %v131
    %v133 = vadd.f32 %v132, 1.1283791
    %v134 = vmul.f32 %v81, %v133
    %v135 = vmul.f32 %v123, 3.8918573e-05
    %v136 = vadd.f32 %v135, 0.001143296
    %v137 = vmul.f32 %v123, %v136
    %v138 = vadd.f32 %v137, 0.014752088
    %v139 = vmul.f32 %v123, %v138
    %v140 = vadd.f32 %v139, 0.112945676
    %v141 = vmul.f32 %v123, %v140
    %v142 = vadd.f32 %v141, 0.4994258
    %v143 = vmul.f32 %v123, %v142
    %v144 = vadd.f32 %v143, 1.0
    %v145 = vrcp.pop %v144
    %v146 = vmul.f32 %v144, %v145
    %v147 = vsub.f32 1.0, %v146
    %v148 = vmul.f32 %v145, %v147
    %v149 = vadd.f32 %v145, %v148
    %vm150 = vweird.f32 %v144
    %vm151 = vweird.f32 %v145
    %vm152 = vmor %vm150, %vm151
    %v153 = vsel %vm152, %v145, %v149
    %v154 = vand.u32 2147483647, %v144
    %vm155 = vcmp.eq.f32.partialorder %v154, 8.507059e+37
    %v156 = vand.u32 %v144, 2147483648
    %v157 = vor.u32 1.1754944e-38, %v156
    %v158 = vsel %vm155, %v157, %v153
    %v159 = vmul.f32 %v134, %v158
    %v160 = vmin.f32 %v159, 1.0
    %v161 = vmax.f32 %v160, -1.0
    %v162 = vadd.f32 %v121, 1.0
    %v163 = vadd.f32 %v161, 1.0
    %v164 = vmul.f32 %v78, %v162
    %v165 = vmul.f32 %v79, %v163
    %v166 = vld [vmem:[#allocation2] sm:$0xff]
    %v167 = vld [vmem:[#allocation2 + $0x8] sm:$0xff]
    %v168 = vpack.c.bf16 %v165, %v164
    %v169 = vld [vmem:[%s3] sm:$0xf]
    %v170 = vld [vmem:[%s3 + $0x4] sm:$0xf]
    %v171 = vld [vmem:[%s3 + $0x8] sm:$0xf]
    %v172 = vld [vmem:[%s3 + $0xc] sm:$0xf]
    %v173 = vld [vmem:[%s3 + $0x10] sm:$0xf]
    %v174 = vld [vmem:[%s3 + $0x14] sm:$0xf]
    %v175 = vld [vmem:[%s3 + $0x18] sm:$0xf]
    %v176 = vld [vmem:[%s3 + $0x1c] sm:$0xf]
    %v185 = vunpack.c.l.b16 %v169
    %v186 = vunpack.c.l.b16 %v170
    %v187 = vunpack.c.l.b16 %v171
    %v188 = vunpack.c.l.b16 %v172
    %v189 = vunpack.c.l.b16 %v173
    %v190 = vunpack.c.l.b16 %v174
    %v191 = vunpack.c.l.b16 %v175
    %v192 = vunpack.c.l.b16 %v176
    %v193 = vpack.c.b16 %v186, %v185
    %v194 = vpack.c.b16 %v188, %v187
    %v195 = vpack.c.b16 %v190, %v189
    %v196 = vpack.c.b16 %v192, %v191
    %vm201 = vcmask 523264
    %v203 = vsel %vm201, %v168, 0
    %205 = vmatpush.bf16.msra.mxu0 0
    %206 = vmatpush.bf16.msra.mxu0 0
    %207 = vmatpush.bf16.msra.mxu0 0
    %208 = vmatpush.bf16.msra.mxu0 0
    %209 = vmatpush.bf16.msra.mxu0 %v196
    %210 = vmatpush.bf16.msra.mxu0 %v195
    %211 = vmatpush.bf16.msra.mxu0 %v194
    %212 = vmatpush.bf16.msra.mxu0 %v193
    %213 = vmatmul.bf16.gmra.mxu0 %v203
    %v214 = vpop.f32.mrf.mxu0
    %v215 = vadd.f32 0.0, %v214
    %v216 = vpop.f32.mrf.mxu0
    %v217 = vadd.f32 0.0, %v216
    %218 = vdwg.mxu0
    %v219 = vadd.f32 %v166, %v215
    %v220 = vadd.f32 %v167, %v217
    %221 = vst.msk [vmem:[#allocation2] sm:$0xff] %vm60, %v219
    %222 = vst.msk [vmem:[#allocation2 + $0x8] sm:$0xff] %vm60, %v220
    // Predicated region
    $region26: #{tpu_custom_call.1} parent=1 // pred_check
      _
    $region27: #{tpu_custom_call.1} parent=1 // pred_check_branch
      %224 = sbr.rel (0) target = $region29
    $region28: #{tpu_custom_call.1} parent=1 // pred_region
      %226 = vsyncadd [#allocation3], 0
      %s227 = sshll.u32 [#allocation2], 4
      %s228 = int_to_ptr.vmem [resolvable:$true] %s227
      %s229 = sshll.u32 %s5, 4
      %s230 = int_to_ptr.hbm [resolvable:$true] %s229
      %235 = dma.vmem_to_hbm [thread:$0]  %s228, 256, %s230, [#allocation3], 128, 128, 8
    $region29: #{tpu_custom_call.1} parent=1 // pred_fallthru
      _
    // Predicated region
    $region30: #{tpu_custom_call.1} parent=1 // pred_check
      _
    $region31: #{tpu_custom_call.1} parent=1 // pred_check_branch
      %237 = sbr.rel (0) target = $region33
    $region32: #{tpu_custom_call.1} parent=1 // pred_region
      %239 = dma.done [#allocation3], 256
    $region33: #{tpu_custom_call.1} parent=1 // pred_fallthru
      _
    %240 = vsyncpa [#allocation3], 1

</llo_original>
